<compile_context>
chip_gen: v7x
topology: tpu7x:2x2x1
jax: 0.10.0
libtpu: 0.0.40
codegen_flags: <defaults>
</compile_context>

<pallas_src>
import jax
import jax.numpy as jnp
from jax import lax
from jax.experimental import pallas as pl
from jax.experimental.pallas import tpu as pltpu


# ------------------------------ Pallas kernel ------------------------------ #
def _rrrb_kernel(p_ref, w_ref, b_ref, o_ref):
    """One column tile: o[:, tile] = W_rep @ patches[:, tile] + b_rep.

    p_ref: (Kt, TM)  transposed im2col patches of zero-padded x
    w_ref: (C,  Kt)  fully reparameterized 3x3 weight (incl. both residuals)
    b_ref: (C,  1)   fully reparameterized bias
    o_ref: (C,  TM)  output tile (lane-dense: last dim is a 128-multiple)
    """
    o_ref[...] = (jnp.dot(w_ref[...], p_ref[...],
                          preferred_element_type=jnp.float32)
                  + b_ref[...]).astype(o_ref.dtype)


# ------------------------- exact reparameterization ------------------------ #
def _reparameterize(w_e, b_e, w_f, b_f, w_r, b_r):
    """Fold expand(1x1) -> pad(b_e) -> fea(3x3) + id -> reduce(1x1) + x
    into a single 3x3 conv (weight (C, C, 3, 3), bias (C,)) on zero-padded x.
    Exact linear-algebra identity (only fp rounding order changes)."""
    Cmid, C = w_e.shape[0], w_e.shape[1]
    We = w_e.reshape(Cmid, C)          # expand 1x1
    Wr = w_r.reshape(C, Cmid)          # reduce 1x1

    # A[:, :, kh, kw] = W_f[:, :, kh, kw] @ We ; center tap += We ("+ y1" skip)
    A = jnp.einsum('mnhw,nc->mchw', w_f, We)
    A = A.at[:, :, 1, 1].add(We)
    # bias after the fea stage: (sum_k W_f_k) @ b_e + b_f + b_e
    c2 = jnp.einsum('mnhw,n->m', w_f, b_e) + b_f + b_e

    # fold the reduce conv; center tap += I for the outer "+ x" skip
    B = jnp.einsum('om,mchw->ochw', Wr, A)
    B = B.at[:, :, 1, 1].add(jnp.eye(C, dtype=B.dtype))
    b_fin = Wr @ c2 + b_r
    return B, b_fin                    # (C, C, 3, 3), (C,)


# ---------------------------------- wrapper -------------------------------- #
@jax.jit
def rrrb_pallas(x, w_e, b_e, w_f, b_f, w_r, b_r):
    """x: (N, C, H, W) NCHW; weights in PyTorch layouts (OIHW / (O,))."""
    N, C, H, W = x.shape
    K2 = 9
    Kt = C * K2
    M = N * H * W

    B, b_fin = _reparameterize(w_e, b_e, w_f, b_f, w_r, b_r)
    Wt = B.reshape(C, Kt)                              # (o, c*9 + kh*3 + kw)
    bt = b_fin.reshape(C, 1)

    # zero padding: the b_e-valued border of pad_tensor is absorbed into b_fin
    xz = jnp.pad(x, ((0, 0), (0, 0), (1, 1), (1, 1)))
    xzt = jnp.transpose(xz, (1, 0, 2, 3))              # (C, N, Hp, Wp)

    # transposed im2col:
    #   patT[c*9 + kh*3 + kw, n*H*W + h*W + w] = xz[n, c, h+kh, w+kw]
    cols = [xzt[:, :, kh:kh + H, kw:kw + W]            # each (C, N, H, W)
            for kh in range(3) for kw in range(3)]
    pat = jnp.stack(cols, axis=1)                      # (C, 9, N, H, W)
    patT = pat.reshape(Kt, M)

    # tile choice: lane-dense (multiple of 128); start at 256 so the demo's
    # M = 512 still yields 2 parallel grid steps (both v7x TensorCores busy),
    # grow for large M to amortize per-step overhead under a VMEM budget.
    TM = 256
    vmem_budget = 8 << 20                              # per double-buffer set
    while (TM < 2048 and M >= 4 * TM
           and (Kt + C) * TM * 4 * 4 <= vmem_budget):
        TM *= 2
    G = pl.cdiv(M, TM)
    Mp = G * TM
    if Mp != M:
        patT = jnp.pad(patT, ((0, 0), (0, Mp - M)))

    out = pl.pallas_call(
        _rrrb_kernel,
        out_shape=jax.ShapeDtypeStruct((C, Mp), x.dtype),
        grid_spec=pltpu.PrefetchScalarGridSpec(
            num_scalar_prefetch=0,
            grid=(G,),
            in_specs=[
                pl.BlockSpec((Kt, TM), lambda i: (0, i)),   # patch tile
                pl.BlockSpec((C, Kt), lambda i: (0, 0)),    # fused weight
                pl.BlockSpec((C, 1), lambda i: (0, 0)),     # fused bias
            ],
            out_specs=pl.BlockSpec((C, TM), lambda i: (0, i)),
        ),
        compiler_params=pltpu.CompilerParams(
            dimension_semantics=("parallel",)),
    )(patT, Wt, bt)

    out = out[:, :M].reshape(C, N, H, W)
    return jnp.transpose(out, (1, 0, 2, 3))            # back to NCHW


# ----------------------------- pure-JAX reference --------------------------- #
def rrrb_ref(x, w_e, b_e, w_f, b_f, w_r, b_r):
    """Literal translation of the PyTorch RRRB forward (incl. pad_tensor)."""
    dn = ("NCHW", "OIHW", "NCHW")
    out = lax.conv_general_dilated(x, w_e, (1, 1), "VALID",
                                   dimension_numbers=dn)
    out = out + b_e[None, :, None, None]
    out_identity = out
    # pad_tensor: zero pad then overwrite the 1-px border with b_e per channel
    pattern = b_e.reshape(1, -1, 1, 1)
    t = jnp.pad(out, ((0, 0), (0, 0), (1, 1), (1, 1)))
    t = t.at[:, :, 0:1, :].set(pattern)
    t = t.at[:, :, -1:, :].set(pattern)
    t = t.at[:, :, :, 0:1].set(pattern)
    t = t.at[:, :, :, -1:].set(pattern)
    out = lax.conv_general_dilated(t, w_f, (1, 1), "VALID",
                                   dimension_numbers=dn)
    out = out + b_f[None, :, None, None] + out_identity
    out = lax.conv_general_dilated(out, w_r, (1, 1), "VALID",
                                   dimension_numbers=dn)
    out = out + b_r[None, :, None, None]
    return out + x


# ------------------------------------ main ---------------------------------- #
if __name__ == "__main__":
    n_feats, ratio = 4, 2
    N, H, W = 2, 16, 16
    Cmid = ratio * n_feats

    key = jax.random.PRNGKey(0)
    ks = jax.random.split(key, 7)
    x   = jax.random.normal(ks[0], (N, n_feats, H, W), jnp.float32)
    w_e = jax.random.normal(ks[1], (Cmid, n_feats, 1, 1), jnp.float32) * 0.1
    b_e = jax.random.normal(ks[2], (Cmid,), jnp.float32) * 0.1
    w_f = jax.random.normal(ks[3], (Cmid, Cmid, 3, 3), jnp.float32) * 0.1
    b_f = jax.random.normal(ks[4], (Cmid,), jnp.float32) * 0.1
    w_r = jax.random.normal(ks[5], (n_feats, Cmid, 1, 1), jnp.float32) * 0.1
    b_r = jax.random.normal(ks[6], (n_feats,), jnp.float32) * 0.1

    out = rrrb_pallas(x, w_e, b_e, w_f, b_f, w_r, b_r)
    out = jax.block_until_ready(out)

    ref = rrrb_ref(x, w_e, b_e, w_f, b_f, w_r, b_r)
    assert out.shape == (N, n_feats, H, W), out.shape
    max_err = float(jnp.max(jnp.abs(out - ref)))
    assert jnp.allclose(out, ref, atol=1e-4, rtol=1e-4), max_err

    print("KERNEL_OK")
</pallas_src>

<mosaic_0001>
module attributes {stable_mosaic.version = 11 : i64} {
  func.func @_rrrb_kernel(%arg0: i32, %arg1: memref<36x256xf32, #tpu.memory_space<vmem>>, %arg2: memref<4x36xf32, #tpu.memory_space<vmem>>, %arg3: memref<4x1xf32, #tpu.memory_space<vmem>>, %arg4: memref<4x256xf32, #tpu.memory_space<vmem>>) attributes {dimension_semantics = [#tpu.dimension_semantics<parallel>], iteration_bounds = array<i64: 2>, scalar_prefetch = 0 : i64, scratch_operands = 0 : i64, tpu.core_type = #tpu.core_type<tc>, window_params = [{transform_indices = @transform_0, window_bounds = array<i64: 36, 256>}, {pipeline_mode = #tpu.pipeline_mode<synchronous>, transform_indices = @transform_1, window_bounds = array<i64: 4, 36>}, {pipeline_mode = #tpu.pipeline_mode<synchronous>, transform_indices = @transform_2, window_bounds = array<i64: 4, 1>}, {transform_indices = @transform_3, window_bounds = array<i64: 4, 256>}]} {
    %c0 = arith.constant 0 : index
    %c0_0 = arith.constant 0 : index
    %0 = vector.load %arg2[%c0, %c0_0] : memref<4x36xf32, #tpu.memory_space<vmem>>, vector<4x36xf32>
    %c0_1 = arith.constant 0 : index
    %c0_2 = arith.constant 0 : index
    %1 = vector.load %arg1[%c0_1, %c0_2] : memref<36x256xf32, #tpu.memory_space<vmem>>, vector<36x256xf32>
    %cst = arith.constant dense<0.000000e+00> : vector<4x256xf32>
    %2 = tpu.matmul %0, %1, %cst {dimension_numbers = #tpu.dot_dimension_numbers<[1], [0], [0], [1], [0, 0, 1, 1], [], []>} : vector<4x36xf32>, vector<36x256xf32>, vector<4x256xf32> -> vector<4x256xf32>
    %c0_3 = arith.constant 0 : index
    %c0_4 = arith.constant 0 : index
    %3 = vector.load %arg3[%c0_3, %c0_4] : memref<4x1xf32, #tpu.memory_space<vmem>>, vector<4x1xf32>
    %4 = vector.broadcast %3 : vector<4x1xf32> to vector<4x256xf32>
    %5 = arith.addf %2, %4 : vector<4x256xf32>
    %c0_5 = arith.constant 0 : index
    %c0_6 = arith.constant 0 : index
    %6 = vector.load %arg4[%c0_5, %c0_6] : memref<4x256xf32, #tpu.memory_space<vmem>>, vector<4x256xf32>
    tpu.vector_store %arg4[%c0_5, %c0_6], %5 {strides = array<i32>} : memref<4x256xf32, #tpu.memory_space<vmem>>, vector<4x256xf32>,
    return
  }
  func.func @transform_0(%arg0: i32) -> (i32, i32) {
    %c0_i32 = arith.constant 0 : i32
    %c0_i32_0 = arith.constant 0 : i32
    return %c0_i32, %arg0 : i32, i32
  }
  func.func @transform_1(%arg0: i32) -> (i32, i32) {
    %c0_i32 = arith.constant 0 : i32
    %c0_i32_0 = arith.constant 0 : i32
    %c0_i32_1 = arith.constant 0 : i32
    return %c0_i32, %c0_i32_0 : i32, i32
  }
  func.func @transform_2(%arg0: i32) -> (i32, i32) {
    %c0_i32 = arith.constant 0 : i32
    %c0_i32_0 = arith.constant 0 : i32
    %c0_i32_1 = arith.constant 0 : i32
    return %c0_i32, %c0_i32_0 : i32, i32
  }
  func.func @transform_3(%arg0: i32) -> (i32, i32) {
    %c0_i32 = arith.constant 0 : i32
    %c0_i32_0 = arith.constant 0 : i32
    return %c0_i32, %arg0 : i32, i32
  }
}

</mosaic_0001>

<llo_original>
// kernel: rrrb_pallas.1
$region0: #{rrrb_pallas.1}
  #allocation0 [shape = 'u32[]', space=smem, size = 0x4, offset = 0x4, fixed_abs, tag = 'smem constant byte address 0x4 - core index']
  #allocation1 [shape = 'u32[144,128]{1,0:T(1,128)}', space=vmem, size = 0x12000, scoped, tag = 'internal scratch']
  %s0 = inlined_call_operand.vmem [shape: f32[36,512], index: 0, kind: input, shape index: {}]
  %s1 = inlined_call_operand.vmem [shape: f32[4,36], index: 1, kind: input, shape index: {}]
  %s2 = inlined_call_operand.vmem [shape: f32[4,1], index: 2, kind: input, shape index: {}]
  %s3 = inlined_call_operand.vmem [shape: f32[4,512], index: 3, kind: output, shape index: {}]
  %s4 = sld [smem:[#allocation0]]
  $region68: #{rrrb_pallas.1} parent=0
    _
  %s6 = ssub.s32 1, %s4
  %s7 = scalar_select 0, %s6, %s4
  $region1: #{rrrb_pallas.1} parent=0
    #allocation2 [shape = 'u8[81920]{0}', space=vmem, size = 0x14000, scoped, tag = 'input window, operand 0']
    loop: start=0, step=1, limit=4
    $region2: #{rrrb_pallas.1} parent=1 // loop_pre_header
      _
    $region3: #{rrrb_pallas.1} parent=1 // loop_header
      %s9 = sphi 0, %s13
      %p10 = scmp.ge.s32.totalorder %s9, 4
      %s19 = sphi 0, %s21
      %s22 = sphi 0, %s19
      %s23 = sphi 0, %s22
      %s39 = sphi 0, %s23
      %s43 = sphi 0, %s43
      %s45 = sphi 0, %s43
      %s46 = sphi 0, %s45
      %s60 = sphi 0, %s46
      %s64 = sphi 0, %s64
      %s66 = sphi 0, %s64
      %s67 = sphi 0, %s66
      %s81 = sphi 0, %s67
      %s87 = sphi 0, %s89
      %s90 = sphi 0, %s87
      %s91 = sphi 0, %s90
      %s107 = sphi 0, %s91
    $region4: #{rrrb_pallas.1} parent=1 // loop_header_branch
      %12 = sbr.rel (%p10) target = $region8
    $region5: #{rrrb_pallas.1} parent=1 // loop_body
      %s14 = ssub.s32 %s9, 1
      %s15 = ssub.s32 %s9, 2
      %s16 = sadd.s32 %s9, 1
      %s17 = ssub.s32 %s9, %s16
      %p18 = scmp.eq.s32.totalorder %s17, 0
      %s20 = sadd.s32 %s19, 1
      %s21 = scalar_select %p18, %s19, %s20
      %p24 = pneg %p18
      %p25 = scmp.eq.s32.totalorder %s9, 1
      %p26 = por %p24, %p25
      %p27 = scmp.ne.s32.totalorder %s19, %s22
      %p28 = scmp.eq.s32.totalorder %s9, 0
      %p29 = por %p27, %p28
      %p30 = scmp.ne.s32.totalorder %s19, %s22
      %p31 = scmp.eq.s32.totalorder %s14, 1
      %p32 = por %p30, %p31
      %p33 = scmp.ne.s32.totalorder %s22, %s23
      %p34 = scmp.eq.s32.totalorder %s14, 0
      %p35 = por %p33, %p34
      %p36 = scmp.ne.s32.totalorder %s22, %s23
      %p37 = scmp.eq.s32.totalorder %s15, 1
      %p38 = por %p36, %p37
      %p40 = scmp.ne.s32.totalorder %s23, %s39
      %p41 = scmp.eq.s32.totalorder %s15, 0
      %p42 = por %p40, %p41
      %s44 = sadd.s32 %s43, 1
      %p47 = scmp.eq.s32.totalorder %s9, 1
      %p48 = scmp.ne.s32.totalorder %s43, %s45
      %p49 = scmp.eq.s32.totalorder %s9, 0
      %p50 = por %p48, %p49
      %p51 = scmp.ne.s32.totalorder %s43, %s45
      %p52 = scmp.eq.s32.totalorder %s14, 1
      %p53 = por %p51, %p52
      %p54 = scmp.ne.s32.totalorder %s45, %s46
      %p55 = scmp.eq.s32.totalorder %s14, 0
      %p56 = por %p54, %p55
      %p57 = scmp.ne.s32.totalorder %s45, %s46
      %p58 = scmp.eq.s32.totalorder %s15, 1
      %p59 = por %p57, %p58
      %p61 = scmp.ne.s32.totalorder %s46, %s60
      %p62 = scmp.eq.s32.totalorder %s15, 0
      %p63 = por %p61, %p62
      %s65 = sadd.s32 %s64, 1
      %p68 = scmp.eq.s32.totalorder %s9, 1
      %p69 = scmp.ne.s32.totalorder %s64, %s66
      %p70 = scmp.eq.s32.totalorder %s9, 0
      %p71 = por %p69, %p70
      %p72 = scmp.ne.s32.totalorder %s64, %s66
      %p73 = scmp.eq.s32.totalorder %s14, 1
      %p74 = por %p72, %p73
      %p75 = scmp.ne.s32.totalorder %s66, %s67
      %p76 = scmp.eq.s32.totalorder %s14, 0
      %p77 = por %p75, %p76
      %p78 = scmp.ne.s32.totalorder %s66, %s67
      %p79 = scmp.eq.s32.totalorder %s15, 1
      %p80 = por %p78, %p79
      %p82 = scmp.ne.s32.totalorder %s67, %s81
      %p83 = scmp.eq.s32.totalorder %s15, 0
      %p84 = por %p82, %p83
      %s85 = ssub.s32 %s9, %s16
      %p86 = scmp.eq.s32.totalorder %s85, 0
      %s88 = sadd.s32 %s87, 1
      %s89 = scalar_select %p86, %s87, %s88
      %p92 = pneg %p86
      %p93 = scmp.eq.s32.totalorder %s9, 1
      %p94 = por %p92, %p93
      %p95 = scmp.ne.s32.totalorder %s87, %s90
      %p96 = scmp.eq.s32.totalorder %s9, 0
      %p97 = por %p95, %p96
      %p98 = scmp.ne.s32.totalorder %s87, %s90
      %p99 = scmp.eq.s32.totalorder %s14, 1
      %p100 = por %p98, %p99
      %p101 = scmp.ne.s32.totalorder %s90, %s91
      %p102 = scmp.eq.s32.totalorder %s14, 0
      %p103 = por %p101, %p102
      %p104 = scmp.ne.s32.totalorder %s90, %s91
      %p105 = scmp.eq.s32.totalorder %s15, 1
      %p106 = por %p104, %p105
      %p108 = scmp.ne.s32.totalorder %s91, %s107
      %p109 = scmp.eq.s32.totalorder %s15, 0
      %p110 = por %p108, %p109
      %p111 = scmp.le.s32.totalorder 1, %s9
      %p112 = scmp.lt.s32.totalorder %s9, 3
      %p113 = pnand %p111, %p112
      %p114 = pneg %p113
      // Predicated region
      $region9: #{rrrb_pallas.1} parent=5 // pred_check
        _
      $region10: #{rrrb_pallas.1} parent=5 // pred_check_branch
        %116 = sbr.rel (%p113) target = $region12
      $region11: #{rrrb_pallas.1} parent=5 // pred_region
        %s117 = ssub.s32 %s9, 1
        // Predicated region
        $region13: #{rrrb_pallas.1} parent=11 // pred_check
          %p118 = pneg %p56
        $region14: #{rrrb_pallas.1} parent=11 // pred_check_branch
          %120 = sbr.rel (%p118) target = $region16
        $region15: #{rrrb_pallas.1} parent=11 // pred_region
          _
        $region16: #{rrrb_pallas.1} parent=11 // pred_fallthru
          _
        // Predicated region
        $region17: #{rrrb_pallas.1} parent=11 // pred_check
          %p121 = pneg %p77
        $region18: #{rrrb_pallas.1} parent=11 // pred_check_branch
          %123 = sbr.rel (%p121) target = $region20
        $region19: #{rrrb_pallas.1} parent=11 // pred_region
          _
        $region20: #{rrrb_pallas.1} parent=11 // pred_fallthru
          _
      $region12: #{rrrb_pallas.1} parent=5 // pred_fallthru
        _
      %p124 = scmp.lt.s32.totalorder %s9, 2
      // Predicated region
      $region21: #{rrrb_pallas.1} parent=5 // pred_check
        %p125 = pneg %p124
      $region22: #{rrrb_pallas.1} parent=5 // pred_check_branch
        %127 = sbr.rel (%p125) target = $region24
      $region23: #{rrrb_pallas.1} parent=5 // pred_region
        // Predicated region
        $region25: #{rrrb_pallas.1} parent=23 // pred_check
          %p128 = pneg %p29
        $region26: #{rrrb_pallas.1} parent=23 // pred_check_branch
          %130 = sbr.rel (%p128) target = $region28
        $region27: #{rrrb_pallas.1} parent=23 // pred_region
          %s131 = sand.u32 %s19, 1
          %s132 = sand.u32 %s19, 1
          %s133 = smul.addr %s132, 80
          %s134 = scalar_lea.vmem [#allocation2], %s133
          %s135 = smul.u32 2, %s9
          %s136 = smul.addr %s135, 8
          %s137 = scalar_lea.vmem %s0, %s136
          // Predicated region
          $region29: #{rrrb_pallas.1} parent=27 // pred_check
            _
          $region30: #{rrrb_pallas.1} parent=27 // pred_check_branch
            %139 = sbr.rel (0) target = $region32
          $region31: #{rrrb_pallas.1} parent=27 // pred_region
            // Predicated region
            $region33: #{rrrb_pallas.1} parent=31 // pred_check
              _
            $region34: #{rrrb_pallas.1} parent=31 // pred_check_branch
              %141 = sbr.rel (0) target = $region36
            $region35: #{rrrb_pallas.1} parent=31 // pred_region
              loop: start=0, step=1, limit=1
              $region37: #{rrrb_pallas.1} parent=35 // loop_pre_header
                _
              $region38: #{rrrb_pallas.1} parent=35 // loop_header
                %s143 = sphi 0, %s147
                %p144 = scmp.ge.s32.totalorder %s143, 1
                %s148 = sphi %s137, %s137
                %s149 = sphi %s134, %s134
              $region39: #{rrrb_pallas.1} parent=35 // loop_header_branch
                %146 = sbr.rel (%p144) target = $region43
              $region40: #{rrrb_pallas.1} parent=35 // loop_body
                %v150 = vld [vmem:[%s148] sm:$0xff]
                %151 = vst [vmem:[%s149] sm:$0xff] %v150
                %v152 = vld [vmem:[%s148 + $0x8] sm:$0xff]
                %153 = vst [vmem:[%s149 + $0x8] sm:$0xff] %v152
                %v154 = vld [vmem:[%s148 + $0x20] sm:$0xff]
                %155 = vst [vmem:[%s149 + $0x10] sm:$0xff] %v154
                %v156 = vld [vmem:[%s148 + $0x28] sm:$0xff]
                %157 = vst [vmem:[%s149 + $0x18] sm:$0xff] %v156
                %v158 = vld [vmem:[%s148 + $0x40] sm:$0xff]
                %159 = vst [vmem:[%s149 + $0x20] sm:$0xff] %v158
                %v160 = vld [vmem:[%s148 + $0x48] sm:$0xff]
                %161 = vst [vmem:[%s149 + $0x28] sm:$0xff] %v160
                %v162 = vld [vmem:[%s148 + $0x60] sm:$0xff]
                %163 = vst [vmem:[%s149 + $0x30] sm:$0xff] %v162
                %v164 = vld [vmem:[%s148 + $0x68] sm:$0xff]
                %165 = vst [vmem:[%s149 + $0x38] sm:$0xff] %v164
                %v166 = vld [vmem:[%s148 + $0x80] sm:$0xff]
                %167 = vst [vmem:[%s149 + $0x40] sm:$0xff] %v166
                %v168 = vld [vmem:[%s148 + $0x88] sm:$0xff]
                %169 = vst [vmem:[%s149 + $0x48] sm:$0xff] %v168
              $region41: #{rrrb_pallas.1} parent=35 // loop_footer
                %s147 = sadd.s32 1, %s143
              $region42: #{rrrb_pallas.1} parent=35 // loop_footer_branch
                %142 = sbr.rel target = $region38
              $region43: #{rrrb_pallas.1} parent=35 // loop_exit
                _
            $region36: #{rrrb_pallas.1} parent=31 // pred_fallthru
              _
            // Predicated region
            $region44: #{rrrb_pallas.1} parent=31 // pred_check
              _
            $region45: #{rrrb_pallas.1} parent=31 // pred_check_branch
              %171 = sbr.rel target = $region47
            $region46: #{rrrb_pallas.1} parent=31 // pred_region
              _
            $region47: #{rrrb_pallas.1} parent=31 // pred_fallthru
              _
          $region32: #{rrrb_pallas.1} parent=27 // pred_fallthru
            _
          %172 = vnop
        $region28: #{rrrb_pallas.1} parent=23 // pred_fallthru
          _
      $region24: #{rrrb_pallas.1} parent=5 // pred_fallthru
        _
      %p173 = scmp.le.s32.totalorder 1, %s9
      %p174 = scmp.lt.s32.totalorder %s9, 3
      %p175 = pnand %p173, %p174
      %p176 = pneg %p175
      // Predicated region
      $region48: #{rrrb_pallas.1} parent=5 // pred_check
        _
      $region49: #{rrrb_pallas.1} parent=5 // pred_check_branch
        %178 = sbr.rel (%p175) target = $region51
      $region50: #{rrrb_pallas.1} parent=5 // pred_region
        %s179 = ssub.s32 %s9, 1
        %s180 = sand.u32 %s22, 1
        %s181 = sand.u32 %s22, 1
        %s182 = smul.addr %s181, 80
        %s183 = scalar_lea.vmem [#allocation2], %s182
        // Predicated region
        $region52: #{rrrb_pallas.1} parent=50 // pred_check
          %p184 = pneg %p35
        $region53: #{rrrb_pallas.1} parent=50 // pred_check_branch
          %186 = sbr.rel (%p184) target = $region55
        $region54: #{rrrb_pallas.1} parent=50 // pred_region
          _
        $region55: #{rrrb_pallas.1} parent=50 // pred_fallthru
          _
        %s187 = sand.u32 %s22, 1
        %s188 = sand.u32 %s22, 1
        %s189 = smul.addr %s188, 80
        %s190 = scalar_lea.vmem [#allocation2], %s189
        %p191 = pneg %p35
        %p192 = pneg %p32
        %p193 = pneg %p56
        %p194 = pneg %p53
        %p195 = pneg %p77
        %p196 = pneg %p74
        %p197 = pneg %p103
        %p198 = pneg %p100
        %s199 = smul.u32 2, %s14
        %p200 = scmp.lt.s32.totalorder %s199, 3
        %s201 = scalar_select %p200, %s199, 3
        %s202 = smul.addr %s201, 4
        %s203 = scalar_lea.vmem %s3, %s202
        %s204 = smul.u32 2, %s14
        %s205 = smul.u32 2, %s14
        %p206 = scmp.lt.s32.totalorder %s205, 3
        %s207 = scalar_select %p206, %s205, 3
        %s208 = smul.addr %s207, 4
        %s209 = scalar_lea.vmem %s3, %s208
        %s210 = smul.u32 2, %s14
        %v211 = vld [vmem:[%s1] sm:$0xf]
        %v212 = vld [vmem:[%s183] sm:$0xff]
        %v213 = vld [vmem:[%s183 + $0x8] sm:$0xff]
        %v214 = vld [vmem:[%s183 + $0x10] sm:$0xff]
        %v215 = vld [vmem:[%s183 + $0x18] sm:$0xff]
        %v216 = vld [vmem:[%s183 + $0x20] sm:$0xff]
        %v217 = vld [vmem:[%s183 + $0x28] sm:$0xff]
        %v218 = vld [vmem:[%s183 + $0x30] sm:$0xff]
        %v219 = vld [vmem:[%s183 + $0x38] sm:$0xff]
        %v220 = vld [vmem:[%s183 + $0x40] sm:$0xf]
        %v221 = vld [vmem:[%s183 + $0x48] sm:$0xf]
        %v222 = vld [vmem:[%s2] sm:$0xf]
        %224 = vset.pattern.permute.xlu0 0
        %225 = vperm.xlu0 %224, %v222
        %v226 = vpop.permute.xlu0 %225
        %vm228 = vcmask 293888
        %v230 = vsel %vm228, %v211, 0
        %vm232 = vcmask 1043456
        %v234 = vsel %vm232, %v220, 0
        %v237 = vsel %vm232, %v221, 0
        %239 = vmatprep.subr.mxu0 %v213
        %240 = vmatpush1.msra.mxu0 %v212
        %241 = vmatprep.subr.mxu0 %v215
        %242 = vmatpush1.msra.mxu0 %v214
        %243 = vmatprep.subr.mxu0 %v217
        %244 = vmatpush1.msra.mxu0 %v216
        %245 = vmatprep.subr.mxu0 %v219
        %246 = vmatpush1.msra.mxu0 %v218
        %247 = vmatprep.subr.mxu0 %v237
        %248 = vmatpush1.msra.mxu0 %v234
        %249 = vmatprep.subr.mxu0 0.0
        %250 = vmatpush1.msra.mxu0 0.0
        %251 = vmatprep.subr.mxu0 0.0
        %252 = vmatpush1.msra.mxu0 0.0
        %253 = vmatprep.subr.mxu0 0.0
        %254 = vmatpush1.msra.mxu0 0.0
        %255 = vmatprep.subr.mxu0 0.0
        %256 = vmatpush1.msra.mxu0 0.0
        %257 = vmatprep.subr.mxu0 0.0
        %258 = vmatpush1.msra.mxu0 0.0
        %259 = vmatprep.subr.mxu0 0.0
        %260 = vmatpush1.msra.mxu0 0.0
        %261 = vmatprep.subr.mxu0 0.0
        %262 = vmatpush1.msra.mxu0 0.0
        %263 = vmatprep.subr.mxu0 0.0
        %264 = vmatpush1.msra.mxu0 0.0
        %265 = vmatprep.subr.mxu0 0.0
        %266 = vmatpush1.msra.mxu0 0.0
        %267 = vmatprep.subr.mxu0 0.0
        %268 = vmatpush1.msra.mxu0 0.0
        %269 = vmatprep.subr.mxu0 0.0
        %270 = vmatpush1.msra.mxu0 0.0
        %271 = vmatprep.subr.mxu0 0.0
        %272 = vmatpush1.msra.mxu0 0.0
        %273 = vmatprep.subr.mxu0 0.0
        %274 = vmatpush1.msra.mxu0 0.0
        %275 = vmatprep.subr.mxu0 0.0
        %276 = vmatpush1.msra.mxu0 0.0
        %277 = vmatprep.subr.mxu0 0.0
        %278 = vmatpush1.msra.mxu0 0.0
        %279 = vmatprep.subr.mxu0 0.0
        %280 = vmatpush1.msra.mxu0 0.0
        %281 = vmatprep.subr.mxu0 0.0
        %282 = vmatpush1.msra.mxu0 0.0
        %283 = vmatprep.subr.mxu0 0.0
        %284 = vmatpush1.msra.mxu0 0.0
        %285 = vmatprep.subr.mxu0 0.0
        %286 = vmatpush1.msra.mxu0 0.0
        %287 = vmatprep.subr.mxu0 0.0
        %288 = vmatpush1.msra.mxu0 0.0
        %289 = vmatprep.subr.mxu0 0.0
        %290 = vmatpush1.msra.mxu0 0.0
        %291 = vmatprep.subr.mxu0 0.0
        %292 = vmatpush1.msra.mxu0 0.0
        %293 = vmatprep.subr.mxu0 0.0
        %294 = vmatpush1.msra.mxu0 0.0
        %295 = vmatprep.subr.mxu0 0.0
        %296 = vmatpush1.msra.mxu0 0.0
        %297 = vmatprep.subr.mxu0 0.0
        %298 = vmatpush1.msra.mxu0 0.0
        %299 = vmatprep.subr.mxu0 0.0
        %300 = vmatpush1.msra.mxu0 0.0
        %301 = vmatprep.subr.mxu0 0.0
        %302 = vmatpush1.msra.mxu0 0.0
        %303 = vmatprep.mubr.f32.mxu0 0.0
        %304 = vmatmul.mubr.f32.gmra.mrb[0].mxu0 %v230
        %v305 = vpop.f32.mrb[0].mxu0
        %v306 = vadd.f32 %v226, %v305
        %v307 = vpop.f32.mrb[0].mxu0
        %v308 = vadd.f32 %v226, %v307
        %309 = vdwg.mxu0
        %v312 = vcombine.low %v306, %v308
        %314 = vst [vmem:[%s209] sm:$0xff] %v312
        %s315 = smul.u32 2, %s14
        %p316 = scmp.lt.s32.totalorder %s315, 3
        %s317 = scalar_select %p316, %s315, 3
        %s318 = smul.addr %s317, 4
        %s319 = scalar_lea.vmem %s3, %s318
        // Predicated region
        $region56: #{rrrb_pallas.1} parent=50 // pred_check
          %p320 = pneg %p100
        $region57: #{rrrb_pallas.1} parent=50 // pred_check_branch
          %322 = sbr.rel (%p320) target = $region59
        $region58: #{rrrb_pallas.1} parent=50 // pred_region
          %s323 = smul.u32 2, %s14
        $region59: #{rrrb_pallas.1} parent=50 // pred_fallthru
          _
      $region51: #{rrrb_pallas.1} parent=5 // pred_fallthru
        _
      %p324 = scmp.le.s32.totalorder 2, %s9
      // Predicated region
      $region60: #{rrrb_pallas.1} parent=5 // pred_check
        %p325 = pneg %p324
      $region61: #{rrrb_pallas.1} parent=5 // pred_check_branch
        %327 = sbr.rel (%p325) target = $region63
      $region62: #{rrrb_pallas.1} parent=5 // pred_region
        %s328 = ssub.s32 %s9, 2
        // Predicated region
        $region64: #{rrrb_pallas.1} parent=62 // pred_check
          %p329 = pneg %p106
        $region65: #{rrrb_pallas.1} parent=62 // pred_check_branch
          %331 = sbr.rel (%p329) target = $region67
        $region66: #{rrrb_pallas.1} parent=62 // pred_region
          %s332 = smul.u32 2, %s15
          %p333 = scmp.lt.s32.totalorder %s332, 3
          %s334 = scalar_select %p333, %s332, 3
          %s335 = smul.addr %s334, 4
          %s336 = scalar_lea.vmem %s3, %s335
        $region67: #{rrrb_pallas.1} parent=62 // pred_fallthru
          _
      $region63: #{rrrb_pallas.1} parent=5 // pred_fallthru
        _
    $region6: #{rrrb_pallas.1} parent=1 // loop_footer
      %s13 = sadd.s32 1, %s9
    $region7: #{rrrb_pallas.1} parent=1 // loop_footer_branch
      %8 = sbr.rel target = $region3
    $region8: #{rrrb_pallas.1} parent=1 // loop_exit
      _

</llo_original>
